<compile_context>
chip_gen: v6e
topology: v6e:2x2x1
jax: 0.10.0
libtpu: 0.0.40
codegen_flags: <defaults>
</compile_context>

<pallas_src>
import jax
import jax.numpy as jnp
from jax.experimental import pallas as pl
from jax.experimental.pallas import tpu as pltpu

LN_EPS = 1e-5     # nn.LayerNorm default eps
L2_EPS = 1e-12    # F.normalize default eps


def contrastive_branch_kernel(x_ref, w1_ref, b1_ref, w2_ref, b2_ref,
                              gamma_ref, beta_ref, out_ref):
    f32 = jnp.float32

    # ---- Linear1 (+bias) + ReLU.
    # Weights are pre-transposed to (D_in, H) and already in the compute dtype
    # (bf16 by default); x is cast per-tile so the MXU sees bf16 x bf16 with
    # f32 accumulation.
    xc = x_ref[...].astype(w1_ref.dtype)                         # (TM, D_in)
    h = jnp.dot(xc, w1_ref[...], preferred_element_type=f32)     # (TM, H) f32
    h = jnp.maximum(h + b1_ref[...], 0.0)

    # Dropout(0.1): identity in eval/inference mode.
    # TODO(synk): training-mode dropout would use pltpu.prng_seed +
    # pltpu.prng_random_bits to build the keep-mask in-kernel.

    # ---- Linear2 (+bias)
    z = jnp.dot(h.astype(w2_ref.dtype), w2_ref[...],
                preferred_element_type=f32)                      # (TM, E) f32
    z = z + b2_ref[...]

    # ---- LayerNorm over the embedding (lane) axis, one-pass statistics:
    # s1 = sum(z), s2 = sum(z^2)  ->  mu, var  (2 lane reductions, 1 z pass).
    e_inv = 1.0 / z.shape[-1]
    s1 = jnp.sum(z, axis=-1, keepdims=True)
    s2 = jnp.sum(z * z, axis=-1, keepdims=True)
    mu = s1 * e_inv
    var = jnp.maximum(s2 * e_inv - mu * mu, 0.0)
    ln = (z - mu) * jax.lax.rsqrt(var + LN_EPS)                  # EUP rsqrt
    ln = ln * gamma_ref[...] + beta_ref[...]

    # ---- F.normalize(dim=1): x / max(||x||_2, 1e-12)
    sumsq = jnp.sum(ln * ln, axis=-1, keepdims=True)
    inv_norm = jax.lax.rsqrt(jnp.maximum(sumsq, L2_EPS * L2_EPS))
    out_ref[...] = (ln * inv_norm).astype(out_ref.dtype)


def _round_up(n, m):
    return ((n + m - 1) // m) * m


def _invariant_spec(shape):
    """Grid-invariant operand: constant index_map; single-buffered when the
    installed Pallas supports pipeline_mode=pl.Buffered(1)."""
    idx = lambda i: (0, 0)
    if hasattr(pl, "Buffered"):
        try:
            return pl.BlockSpec(shape, idx, pipeline_mode=pl.Buffered(1))
        except TypeError:
            pass
    return pl.BlockSpec(shape, idx)


def contrastive_branch(x, params, *, block_rows=None,
                       compute_dtype=jnp.bfloat16,
                       vmem_budget_bytes=32 << 20):
    """Pallas forward of ContrastiveBranch (eval mode).

    params (PyTorch layout):
      w1: (H, D_in)   b1: (H,)     with H = D_in // 2
      w2: (E, H)      b2: (E,)
      gamma, beta: (E,)            LayerNorm affine params
    """
    B, D_in = x.shape
    H = params["w1"].shape[0]
    E = params["w2"].shape[0]
    f32 = jnp.float32
    cd = jnp.dtype(compute_dtype) if compute_dtype is not None else x.dtype

    # One-time (trace-level) transposes + casts: MXU-ready (in, out) layout and
    # bf16 operands -> native MXU throughput, half the weight DMA/VMEM bytes.
    w1_t = jnp.transpose(params["w1"]).astype(cd)   # (D_in, H)
    w2_t = jnp.transpose(params["w2"]).astype(cd)   # (H, E)
    b1_r = params["b1"].astype(f32).reshape(1, H)
    b2_r = params["b2"].astype(f32).reshape(1, E)
    g_r = params["gamma"].astype(f32).reshape(1, E)
    be_r = params["beta"].astype(f32).reshape(1, E)

    x_bytes = jnp.dtype(x.dtype).itemsize
    out_bytes = x_bytes
    w_bytes = ((w1_t.size + w2_t.size) * jnp.dtype(cd).itemsize
               + (b1_r.size + b2_r.size + g_r.size + be_r.size) * 4)

    # Sublane packing of the I/O dtype: f32 -> 8, bf16 -> 16, int8/fp8 -> 32.
    sub = {4: 8, 2: 16, 1: 32}.get(x_bytes, 8)

    # Row tile from a VMEM budget: double-buffered x/out tiles + single-buffered
    # resident weights must fit `vmem_budget_bytes` (portable to v7x's 64 MiB).
    # TODO(synk): for very large D_in (weights alone > ~24 MiB) add a K-tiling
    # "arbitrary" grid axis over D_in with an f32 scratch accumulator.
    per_row = 2 * D_in * x_bytes + 2 * E * out_bytes
    if block_rows is None:
        avail = max(vmem_budget_bytes - w_bytes, sub * per_row)
        tm = int(min(1024, avail // per_row))
        tm = max(sub, (tm // sub) * sub)
    else:
        tm = int(block_rows)
    tm = min(tm, _round_up(B, sub))          # don't over-tile small batches
    Bp = _round_up(B, tm)                    # pad instead of whole-batch block

    xp = jnp.pad(x, ((0, Bp - B), (0, 0))) if Bp != B else x
    grid = (Bp // tm,)

    vmem_limit = int(min(100 << 20,
                         max(32 << 20, 2 * (w_bytes + tm * per_row))))

    cost = pl.CostEstimate(
        flops=2 * B * (D_in * H + H * E),
        transcendentals=2 * B,
        bytes_accessed=B * D_in * x_bytes + B * E * out_bytes + w_bytes,
    )

    out = pl.pallas_call(
        contrastive_branch_kernel,
        out_shape=jax.ShapeDtypeStruct((Bp, E), x.dtype),
        grid_spec=pltpu.PrefetchScalarGridSpec(
            num_scalar_prefetch=0,
            grid=grid,
            in_specs=[
                pl.BlockSpec((tm, D_in), lambda i: (i, 0)),   # x row tile
                _invariant_spec(w1_t.shape),
                _invariant_spec(b1_r.shape),
                _invariant_spec(w2_t.shape),
                _invariant_spec(b2_r.shape),
                _invariant_spec(g_r.shape),
                _invariant_spec(be_r.shape),
            ],
            out_specs=pl.BlockSpec((tm, E), lambda i: (i, 0)),
        ),
        compiler_params=pltpu.CompilerParams(
            dimension_semantics=("parallel",),
            vmem_limit_bytes=vmem_limit),
        cost_estimate=cost,
    )(xp, w1_t, b1_r, w2_t, b2_r, g_r, be_r)

    return out[:B] if Bp != B else out


def _reference(x, params, compute_dtype=jnp.bfloat16):
    """Pure-JAX reference mirroring the PyTorch module (eval mode) with the
    same bf16-operand / f32-accumulation matmul numerics as the kernel."""
    f32 = jnp.float32
    cd = jnp.dtype(compute_dtype) if compute_dtype is not None else x.dtype
    w1 = params["w1"].astype(cd).astype(f32)
    w2 = params["w2"].astype(cd).astype(f32)
    xc = x.astype(cd).astype(f32)
    h = jnp.maximum(xc @ w1.T + params["b1"], 0.0)
    z = h.astype(cd).astype(f32) @ w2.T + params["b2"]
    mu = jnp.mean(z, axis=-1, keepdims=True)
    var = jnp.mean((z - mu) ** 2, axis=-1, keepdims=True)
    ln = (z - mu) / jnp.sqrt(var + LN_EPS) * params["gamma"] + params["beta"]
    nrm = jnp.maximum(jnp.linalg.norm(ln, axis=1, keepdims=True), L2_EPS)
    return ln / nrm


if __name__ == "__main__":
    key = jax.random.PRNGKey(0)
    B, D_in, E = 16, 32, 128          # embedding_dim default = 128
    H = D_in // 2
    ks = jax.random.split(key, 7)

    x = jax.random.normal(ks[0], (B, D_in), jnp.float32)
    params = {
        "w1": jax.random.normal(ks[1], (H, D_in), jnp.float32) / jnp.sqrt(D_in),
        "b1": 0.01 * jax.random.normal(ks[2], (H,), jnp.float32),
        "w2": jax.random.normal(ks[3], (E, H), jnp.float32) / jnp.sqrt(H),
        "b2": 0.01 * jax.random.normal(ks[4], (E,), jnp.float32),
        "gamma": 1.0 + 0.1 * jax.random.normal(ks[5], (E,), jnp.float32),
        "beta": 0.1 * jax.random.normal(ks[6], (E,), jnp.float32),
    }

    out = contrastive_branch(x, params)
    out = jax.block_until_ready(out)

    ref = _reference(x, params, jnp.bfloat16)
    assert out.shape == (B, E)
    err = float(jnp.max(jnp.abs(out.astype(jnp.float32) - ref)))
    assert err < 2e-2, f"max abs err {err}"
    # sanity: rows are unit-norm (L2 normalization is done in f32 in-kernel)
    norms = jnp.linalg.norm(out.astype(jnp.float32), axis=1)
    assert jnp.allclose(norms, 1.0, atol=2e-3), "rows not unit-norm"

    print("KERNEL_OK")
</pallas_src>

<mosaic_0001>
module attributes {stable_mosaic.version = 11 : i64} {
  func.func @contrastive_branch_kernel(%arg0: i32, %arg1: memref<16x32xf32, #tpu.memory_space<vmem>>, %arg2: memref<32x16xbf16, #tpu.memory_space<vmem>>, %arg3: memref<1x16xf32, #tpu.memory_space<vmem>>, %arg4: memref<16x128xbf16, #tpu.memory_space<vmem>>, %arg5: memref<1x128xf32, #tpu.memory_space<vmem>>, %arg6: memref<1x128xf32, #tpu.memory_space<vmem>>, %arg7: memref<1x128xf32, #tpu.memory_space<vmem>>, %arg8: memref<16x128xf32, #tpu.memory_space<vmem>>) attributes {dimension_semantics = [#tpu.dimension_semantics<parallel>], iteration_bounds = array<i64: 1>, scalar_prefetch = 0 : i64, scratch_operands = 0 : i64, tpu.core_type = #tpu.core_type<tc>, window_params = [{transform_indices = @transform_0, window_bounds = array<i64: 16, 32>}, {pipeline_mode = #tpu.pipeline_mode<synchronous>, transform_indices = @transform_1, window_bounds = array<i64: 32, 16>}, {pipeline_mode = #tpu.pipeline_mode<synchronous>, transform_indices = @transform_2, window_bounds = array<i64: 1, 16>}, {pipeline_mode = #tpu.pipeline_mode<synchronous>, transform_indices = @transform_3, window_bounds = array<i64: 16, 128>}, {pipeline_mode = #tpu.pipeline_mode<synchronous>, transform_indices = @transform_4, window_bounds = array<i64: 1, 128>}, {pipeline_mode = #tpu.pipeline_mode<synchronous>, transform_indices = @transform_5, window_bounds = array<i64: 1, 128>}, {pipeline_mode = #tpu.pipeline_mode<synchronous>, transform_indices = @transform_6, window_bounds = array<i64: 1, 128>}, {transform_indices = @transform_7, window_bounds = array<i64: 16, 128>}]} {
    %c0 = arith.constant 0 : index
    %c0_0 = arith.constant 0 : index
    %0 = vector.load %arg1[%c0, %c0_0] : memref<16x32xf32, #tpu.memory_space<vmem>>, vector<16x32xf32>
    %1 = arith.truncf %0 : vector<16x32xf32> to vector<16x32xbf16>
    %c0_1 = arith.constant 0 : index
    %c0_2 = arith.constant 0 : index
    %2 = vector.load %arg2[%c0_1, %c0_2] : memref<32x16xbf16, #tpu.memory_space<vmem>>, vector<32x16xbf16>
    %cst = arith.constant dense<0.000000e+00> : vector<16x16xf32>
    %3 = tpu.matmul %1, %2, %cst {dimension_numbers = #tpu.dot_dimension_numbers<[1], [0], [0], [1], [0, 0, 1, 1], [], []>} : vector<16x32xbf16>, vector<32x16xbf16>, vector<16x16xf32> -> vector<16x16xf32>
    %c0_3 = arith.constant 0 : index
    %c0_4 = arith.constant 0 : index
    %4 = vector.load %arg3[%c0_3, %c0_4] : memref<1x16xf32, #tpu.memory_space<vmem>>, vector<1x16xf32>
    %5 = vector.broadcast %4 : vector<1x16xf32> to vector<16x16xf32>
    %6 = arith.addf %3, %5 : vector<16x16xf32>
    %cst_5 = arith.constant 0.000000e+00 : f32
    %7 = vector.broadcast %cst_5 : f32 to vector<16x16xf32>
    %8 = arith.maximumf %6, %7 : vector<16x16xf32>
    %9 = arith.truncf %8 : vector<16x16xf32> to vector<16x16xbf16>
    %c0_6 = arith.constant 0 : index
    %c0_7 = arith.constant 0 : index
    %10 = vector.load %arg4[%c0_6, %c0_7] : memref<16x128xbf16, #tpu.memory_space<vmem>>, vector<16x128xbf16>
    %cst_8 = arith.constant dense<0.000000e+00> : vector<16x128xf32>
    %11 = tpu.matmul %9, %10, %cst_8 {dimension_numbers = #tpu.dot_dimension_numbers<[1], [0], [0], [1], [0, 0, 1, 1], [], []>} : vector<16x16xbf16>, vector<16x128xbf16>, vector<16x128xf32> -> vector<16x128xf32>
    %c0_9 = arith.constant 0 : index
    %c0_10 = arith.constant 0 : index
    %12 = vector.load %arg5[%c0_9, %c0_10] : memref<1x128xf32, #tpu.memory_space<vmem>>, vector<1x128xf32>
    %13 = vector.broadcast %12 : vector<1x128xf32> to vector<16x128xf32>
    %14 = arith.addf %11, %13 : vector<16x128xf32>
    %cst_11 = arith.constant dense<0.000000e+00> : vector<16xf32>
    %15 = vector.multi_reduction <add>, %14, %cst_11 [1] : vector<16x128xf32> to vector<16xf32>
    %16 = vector.shape_cast %15 : vector<16xf32> to vector<16x1xf32>
    %17 = arith.mulf %14, %14 : vector<16x128xf32>
    %cst_12 = arith.constant dense<0.000000e+00> : vector<16xf32>
    %18 = vector.multi_reduction <add>, %17, %cst_12 [1] : vector<16x128xf32> to vector<16xf32>
    %19 = vector.shape_cast %18 : vector<16xf32> to vector<16x1xf32>
    %cst_13 = arith.constant 7.812500e-03 : f32
    %20 = vector.broadcast %cst_13 : f32 to vector<16x1xf32>
    %21 = arith.mulf %16, %20 : vector<16x1xf32>
    %cst_14 = arith.constant 7.812500e-03 : f32
    %22 = vector.broadcast %cst_14 : f32 to vector<16x1xf32>
    %23 = arith.mulf %19, %22 : vector<16x1xf32>
    %24 = arith.mulf %21, %21 : vector<16x1xf32>
    %25 = arith.subf %23, %24 : vector<16x1xf32>
    %cst_15 = arith.constant 0.000000e+00 : f32
    %26 = vector.broadcast %cst_15 : f32 to vector<16x1xf32>
    %27 = arith.maximumf %25, %26 : vector<16x1xf32>
    %28 = vector.broadcast %21 : vector<16x1xf32> to vector<16x128xf32>
    %29 = arith.subf %14, %28 : vector<16x128xf32>
    %cst_16 = arith.constant 9.99999974E-6 : f32
    %30 = vector.broadcast %cst_16 : f32 to vector<16x1xf32>
    %31 = arith.addf %27, %30 : vector<16x1xf32>
    %32 = math.rsqrt %31 : vector<16x1xf32>
    %33 = vector.broadcast %32 : vector<16x1xf32> to vector<16x128xf32>
    %34 = arith.mulf %29, %33 : vector<16x128xf32>
    %c0_17 = arith.constant 0 : index
    %c0_18 = arith.constant 0 : index
    %35 = vector.load %arg6[%c0_17, %c0_18] : memref<1x128xf32, #tpu.memory_space<vmem>>, vector<1x128xf32>
    %36 = vector.broadcast %35 : vector<1x128xf32> to vector<16x128xf32>
    %37 = arith.mulf %34, %36 : vector<16x128xf32>
    %c0_19 = arith.constant 0 : index
    %c0_20 = arith.constant 0 : index
    %38 = vector.load %arg7[%c0_19, %c0_20] : memref<1x128xf32, #tpu.memory_space<vmem>>, vector<1x128xf32>
    %39 = vector.broadcast %38 : vector<1x128xf32> to vector<16x128xf32>
    %40 = arith.addf %37, %39 : vector<16x128xf32>
    %41 = arith.mulf %40, %40 : vector<16x128xf32>
    %cst_21 = arith.constant dense<0.000000e+00> : vector<16xf32>
    %42 = vector.multi_reduction <add>, %41, %cst_21 [1] : vector<16x128xf32> to vector<16xf32>
    %43 = vector.shape_cast %42 : vector<16xf32> to vector<16x1xf32>
    %cst_22 = arith.constant 1.000000e-24 : f32
    %44 = vector.broadcast %cst_22 : f32 to vector<16x1xf32>
    %45 = arith.maximumf %43, %44 : vector<16x1xf32>
    %46 = math.rsqrt %45 : vector<16x1xf32>
    %47 = vector.broadcast %46 : vector<16x1xf32> to vector<16x128xf32>
    %48 = arith.mulf %40, %47 : vector<16x128xf32>
    %c0_23 = arith.constant 0 : index
    %c0_24 = arith.constant 0 : index
    %49 = vector.load %arg8[%c0_23, %c0_24] : memref<16x128xf32, #tpu.memory_space<vmem>>, vector<16x128xf32>
    tpu.vector_store %arg8[%c0_23, %c0_24], %48 {strides = array<i32>} : memref<16x128xf32, #tpu.memory_space<vmem>>, vector<16x128xf32>,
    return
  }
  func.func @transform_0(%arg0: i32) -> (i32, i32) {
    %c0_i32 = arith.constant 0 : i32
    %c0_i32_0 = arith.constant 0 : i32
    return %arg0, %c0_i32 : i32, i32
  }
  func.func @transform_1(%arg0: i32) -> (i32, i32) {
    %c0_i32 = arith.constant 0 : i32
    %c0_i32_0 = arith.constant 0 : i32
    %c0_i32_1 = arith.constant 0 : i32
    return %c0_i32, %c0_i32_0 : i32, i32
  }
  func.func @transform_2(%arg0: i32) -> (i32, i32) {
    %c0_i32 = arith.constant 0 : i32
    %c0_i32_0 = arith.constant 0 : i32
    %c0_i32_1 = arith.constant 0 : i32
    return %c0_i32, %c0_i32_0 : i32, i32
  }
  func.func @transform_3(%arg0: i32) -> (i32, i32) {
    %c0_i32 = arith.constant 0 : i32
    %c0_i32_0 = arith.constant 0 : i32
    %c0_i32_1 = arith.constant 0 : i32
    return %c0_i32, %c0_i32_0 : i32, i32
  }
  func.func @transform_4(%arg0: i32) -> (i32, i32) {
    %c0_i32 = arith.constant 0 : i32
    %c0_i32_0 = arith.constant 0 : i32
    %c0_i32_1 = arith.constant 0 : i32
    return %c0_i32, %c0_i32_0 : i32, i32
  }
  func.func @transform_5(%arg0: i32) -> (i32, i32) {
    %c0_i32 = arith.constant 0 : i32
    %c0_i32_0 = arith.constant 0 : i32
    %c0_i32_1 = arith.constant 0 : i32
    return %c0_i32, %c0_i32_0 : i32, i32
  }
  func.func @transform_6(%arg0: i32) -> (i32, i32) {
    %c0_i32 = arith.constant 0 : i32
    %c0_i32_0 = arith.constant 0 : i32
    %c0_i32_1 = arith.constant 0 : i32
    return %c0_i32, %c0_i32_0 : i32, i32
  }
  func.func @transform_7(%arg0: i32) -> (i32, i32) {
    %c0_i32 = arith.constant 0 : i32
    %c0_i32_0 = arith.constant 0 : i32
    return %arg0, %c0_i32 : i32, i32
  }
}

</mosaic_0001>

<llo_original>
// kernel: tpu_custom_call.1
$region0: #{tpu_custom_call.1}
  #allocation0 [shape = 'u32[]', space=smem, size = 0x4, offset = 0x4, fixed_abs, tag = 'smem constant byte address 0x4 - core index']
  #allocation1 [shape = 'u32[144,128]{1,0:T(1,128)}', space=vmem, size = 0x12000, scoped, tag = 'internal scratch']
  %s0 = inlined_call_operand.vmem [shape: f32[16,32], index: 0, kind: input, shape index: {}]
  %s1 = inlined_call_operand.vmem [shape: bf16[32,16], index: 1, kind: input, shape index: {}]
  %s2 = inlined_call_operand.vmem [shape: f32[1,16], index: 2, kind: input, shape index: {}]
  %s3 = inlined_call_operand.vmem [shape: bf16[16,128], index: 3, kind: input, shape index: {}]
  %s4 = inlined_call_operand.vmem [shape: f32[1,128], index: 4, kind: input, shape index: {}]
  %s5 = inlined_call_operand.vmem [shape: f32[1,128], index: 5, kind: input, shape index: {}]
  %s6 = inlined_call_operand.vmem [shape: f32[1,128], index: 6, kind: input, shape index: {}]
  %s7 = inlined_call_operand.hbm [shape: f32[16,128], index: 7, kind: output, shape index: {}]
  %s8 = sld [smem:[#allocation0]]
  $region38: #{tpu_custom_call.1} parent=0
    _
  %s10 = ssub.s32 1, %s8
  %s11 = scalar_select 0, %s10, %s8
  $region1: #{tpu_custom_call.1} parent=0
    #allocation2 [shape = 'u8[8192]{0}', space=vmem, size = 0x2000, scoped, tag = 'output window, operand 0, single buffered']
    #allocation3 [shape = 's32[1]{0}', space=sflag, size = 0x4, scoped, tag = 'scoped memory for tpu_custom_call.1']
    %12 = vsyncpa [#allocation3], 0
    // Predicated region
    $region2: #{tpu_custom_call.1} parent=1 // pred_check
      _
    $region3: #{tpu_custom_call.1} parent=1 // pred_check_branch
      %14 = sbr.rel (0) target = $region5
    $region4: #{tpu_custom_call.1} parent=1 // pred_region
      _
    $region5: #{tpu_custom_call.1} parent=1 // pred_fallthru
      _
    // Predicated region
    $region6: #{tpu_custom_call.1} parent=1 // pred_check
      _
    $region7: #{tpu_custom_call.1} parent=1 // pred_check_branch
      %16 = sbr.rel (0) target = $region9
    $region8: #{tpu_custom_call.1} parent=1 // pred_region
      _
    $region9: #{tpu_custom_call.1} parent=1 // pred_fallthru
      _
    // Predicated region
    $region10: #{tpu_custom_call.1} parent=1 // pred_check
      _
    $region11: #{tpu_custom_call.1} parent=1 // pred_check_branch
      %18 = sbr.rel (0) target = $region13
    $region12: #{tpu_custom_call.1} parent=1 // pred_region
      _
    $region13: #{tpu_custom_call.1} parent=1 // pred_fallthru
      _
    // Predicated region
    $region14: #{tpu_custom_call.1} parent=1 // pred_check
      _
    $region15: #{tpu_custom_call.1} parent=1 // pred_check_branch
      %20 = sbr.rel (0) target = $region17
    $region16: #{tpu_custom_call.1} parent=1 // pred_region
      _
    $region17: #{tpu_custom_call.1} parent=1 // pred_fallthru
      _
    // Predicated region
    $region18: #{tpu_custom_call.1} parent=1 // pred_check
      _
    $region19: #{tpu_custom_call.1} parent=1 // pred_check_branch
      %22 = sbr.rel (0) target = $region21
    $region20: #{tpu_custom_call.1} parent=1 // pred_region
      _
    $region21: #{tpu_custom_call.1} parent=1 // pred_fallthru
      _
    // Predicated region
    $region22: #{tpu_custom_call.1} parent=1 // pred_check
      _
    $region23: #{tpu_custom_call.1} parent=1 // pred_check_branch
      %24 = sbr.rel (0) target = $region25
    $region24: #{tpu_custom_call.1} parent=1 // pred_region
      _
    $region25: #{tpu_custom_call.1} parent=1 // pred_fallthru
      _
    // Predicated region
    $region26: #{tpu_custom_call.1} parent=1 // pred_check
      _
    $region27: #{tpu_custom_call.1} parent=1 // pred_check_branch
      %26 = sbr.rel (0) target = $region29
    $region28: #{tpu_custom_call.1} parent=1 // pred_region
      _
    $region29: #{tpu_custom_call.1} parent=1 // pred_fallthru
      _
    %v28 = vld [vmem:[%s0] sm:$0xff]
    %v29 = vld [vmem:[%s0 + $0x8] sm:$0xff]
    %v30 = vpack.c.bf16 %v29, %v28
    %v31 = vld [vmem:[%s1] sm:$0xf]
    %v32 = vld [vmem:[%s1 + $0x4] sm:$0xf]
    %v33 = vld [vmem:[%s1 + $0x8] sm:$0xf]
    %v34 = vld [vmem:[%s1 + $0xc] sm:$0xf]
    %v35 = vld [vmem:[%s2] sm:$0x1]
    %v37 = vlaneseq
    %v38 = vshrl.u32 %v37, 7
    %v39 = vsub.s32 0, %v38
    %v40 = vrot.slane %v35, %v39
    %v46 = vunpack.c.l.b16 %v31
    %v47 = vunpack.c.l.b16 %v32
    %v48 = vunpack.c.l.b16 %v33
    %v49 = vunpack.c.l.b16 %v34
    %v50 = vpack.c.b16 %v47, %v46
    %v51 = vpack.c.b16 %v49, %v48
    %vm54 = vcmask 261120
    %v56 = vsel %vm54, %v30, 0
    %58 = vmatprep.subr.bf16.mxu0 0
    %59 = vmatpush1.bf16.msra.mxu0 0
    %60 = vmatprep.subr.bf16.mxu0 0
    %61 = vmatpush1.bf16.msra.mxu0 0
    %62 = vmatprep.subr.bf16.mxu0 0
    %63 = vmatpush1.bf16.msra.mxu0 0
    %64 = vmatprep.subr.bf16.mxu0 0
    %65 = vmatpush1.bf16.msra.mxu0 0
    %66 = vmatprep.subr.bf16.mxu0 0
    %67 = vmatpush1.bf16.msra.mxu0 0
    %68 = vmatprep.subr.bf16.mxu0 0
    %69 = vmatpush1.bf16.msra.mxu0 0
    %70 = vmatprep.subr.bf16.mxu0 0
    %71 = vmatpush1.bf16.msra.mxu0 %v51
    %72 = vmatprep.subr.bf16.mxu0 0
    %73 = vmatpush1.bf16.msra.mxu0 %v50
    %74 = vmatprep.subr.bf16.mxu0 0
    %75 = vmatpush2.bf16.msra.mxu0 0
    %76 = vmatprep.subr.bf16.mxu0 0
    %77 = vmatpush2.bf16.msra.mxu0 0
    %78 = vmatprep.subr.bf16.mxu0 0
    %79 = vmatpush2.bf16.msra.mxu0 0
    %80 = vmatprep.subr.bf16.mxu0 0
    %81 = vmatpush2.bf16.msra.mxu0 0
    %82 = vmatprep.subr.bf16.mxu0 0
    %83 = vmatpush2.bf16.msra.mxu0 0
    %84 = vmatprep.subr.bf16.mxu0 0
    %85 = vmatpush2.bf16.msra.mxu0 0
    %86 = vmatprep.subr.bf16.mxu0 0
    %87 = vmatpush2.bf16.msra.mxu0 0
    %88 = vmatprep.subr.bf16.mxu0 0
    %89 = vmatpush2.bf16.msra.mxu0 0
    %90 = vmatprep.mubr.bf16.mxu0 0
    %91 = vmatmul.mubr.bf16.gmra.mxu0 %v56
    %v92 = vpop.f32.mrf.mxu0
    %v93 = vadd.f32 %v40, %v92
    %v94 = vpop.f32.mrf.mxu0
    %v95 = vpop.f32.mrf.mxu0
    %v96 = vadd.f32 %v40, %v95
    %v97 = vpop.f32.mrf.mxu0
    %98 = vdwg.mxu0
    %v99 = vmax.f32 %v93, 0.0
    %v100 = vmax.f32 %v96, 0.0
    %v101 = vpack.c.bf16 %v100, %v99
    %v102 = vld [vmem:[%s3] sm:$0xf]
    %v103 = vld [vmem:[%s3 + $0x4] sm:$0xf]
    %v104 = vld [vmem:[%s4] sm:$0x1]
    %v106 = vlaneseq
    %v107 = vshrl.u32 %v106, 7
    %v108 = vsub.s32 0, %v107
    %v109 = vrot.slane %v104, %v108
    %v113 = vunpack.c.l.b16 %v102
    %v114 = vunpack.c.l.b16 %v103
    %v115 = vpack.c.b16 %v114, %v113
    %vm117 = vcmask 130048
    %v119 = vsel %vm117, %v101, 0
    %121 = vmatprep.subr.bf16.mxu0 0
    %122 = vmatpush1.bf16.msra.mxu0 0
    %123 = vmatprep.subr.bf16.mxu0 0
    %124 = vmatpush1.bf16.msra.mxu0 0
    %125 = vmatprep.subr.bf16.mxu0 0
    %126 = vmatpush1.bf16.msra.mxu0 0
    %127 = vmatprep.subr.bf16.mxu0 0
    %128 = vmatpush1.bf16.msra.mxu0 0
    %129 = vmatprep.subr.bf16.mxu0 0
    %130 = vmatpush1.bf16.msra.mxu0 0
    %131 = vmatprep.subr.bf16.mxu0 0
    %132 = vmatpush1.bf16.msra.mxu0 0
    %133 = vmatprep.subr.bf16.mxu0 0
    %134 = vmatpush1.bf16.msra.mxu0 0
    %135 = vmatprep.subr.bf16.mxu0 0
    %136 = vmatpush1.bf16.msra.mxu0 %v115
    %137 = vmatprep.subr.bf16.mxu0 0
    %138 = vmatpush2.bf16.msra.mxu0 0
    %139 = vmatprep.subr.bf16.mxu0 0
    %140 = vmatpush2.bf16.msra.mxu0 0
    %141 = vmatprep.subr.bf16.mxu0 0
    %142 = vmatpush2.bf16.msra.mxu0 0
    %143 = vmatprep.subr.bf16.mxu0 0
    %144 = vmatpush2.bf16.msra.mxu0 0
    %145 = vmatprep.subr.bf16.mxu0 0
    %146 = vmatpush2.bf16.msra.mxu0 0
    %147 = vmatprep.subr.bf16.mxu0 0
    %148 = vmatpush2.bf16.msra.mxu0 0
    %149 = vmatprep.subr.bf16.mxu0 0
    %150 = vmatpush2.bf16.msra.mxu0 0
    %151 = vmatprep.subr.bf16.mxu0 0
    %152 = vmatpush2.bf16.msra.mxu0 0
    %153 = vmatprep.mubr.bf16.mxu0 0
    %154 = vmatmul.mubr.bf16.gmra.mxu0 %v119
    %v155 = vpop.f32.mrf.mxu0
    %v156 = vadd.f32 %v109, %v155
    %v157 = vpop.f32.mrf.mxu0
    %v158 = vpop.f32.mrf.mxu0
    %v159 = vadd.f32 %v109, %v158
    %v160 = vpop.f32.mrf.mxu0
    %161 = vdwg.mxu0
    %162 = vadd.xlane.f32.xlu0 %v156
    %v163 = vpop.xlane.xlu0 %162
    %164 = vadd.xlane.f32.xlu0 %v159
    %v165 = vpop.xlane.xlu0 %164
    %v166 = vmul.f32 %v156, %v156
    %v167 = vmul.f32 %v159, %v159
    %168 = vadd.xlane.f32.xlu0 %v166
    %v169 = vpop.xlane.xlu0 %168
    %170 = vadd.xlane.f32.xlu0 %v167
    %v171 = vpop.xlane.xlu0 %170
    %v172 = vmul.f32 %v163, 0.0078125
    %v173 = vmul.f32 %v165, 0.0078125
    %v174 = vmul.f32 %v169, 0.0078125
    %v175 = vmul.f32 %v171, 0.0078125
    %v176 = vmul.f32 %v172, %v172
    %v177 = vmul.f32 %v173, %v173
    %v178 = vsub.f32 %v174, %v176
    %v179 = vsub.f32 %v175, %v177
    %v180 = vmax.f32 %v178, 0.0
    %v181 = vmax.f32 %v179, 0.0
    %v182 = vsub.f32 %v156, %v172
    %v183 = vsub.f32 %v159, %v173
    %v184 = vadd.f32 %v180, 1e-05
    %v185 = vadd.f32 %v181, 1e-05
    %v186 = vrsqrt.pop %v184
    %v187 = vrsqrt.pop %v185
    %v188 = vmul.f32 %v182, %v186
    %v189 = vmul.f32 %v183, %v187
    %v190 = vld [vmem:[%s5] sm:$0x1]
    %v192 = vlaneseq
    %v193 = vshrl.u32 %v192, 7
    %v194 = vsub.s32 0, %v193
    %v195 = vrot.slane %v190, %v194
    %v197 = vmul.f32 %v188, %v195
    %v198 = vmul.f32 %v189, %v195
    %v199 = vld [vmem:[%s6] sm:$0x1]
    %v201 = vlaneseq
    %v202 = vshrl.u32 %v201, 7
    %v203 = vsub.s32 0, %v202
    %v204 = vrot.slane %v199, %v203
    %v206 = vadd.f32 %v197, %v204
    %v207 = vadd.f32 %v198, %v204
    %v208 = vmul.f32 %v206, %v206
    %v209 = vmul.f32 %v207, %v207
    %210 = vadd.xlane.f32.xlu0 %v208
    %v211 = vpop.xlane.xlu0 %210
    %212 = vadd.xlane.f32.xlu0 %v209
    %v213 = vpop.xlane.xlu0 %212
    %v214 = vmax.f32 %v211, 1e-24
    %v215 = vmax.f32 %v213, 1e-24
    %v216 = vrsqrt.pop %v214
    %v217 = vrsqrt.pop %v215
    %v218 = vmul.f32 %v206, %v216
    %v219 = vmul.f32 %v207, %v217
    %220 = vst [vmem:[#allocation2] sm:$0xff] %v218
    %221 = vst [vmem:[#allocation2 + $0x8] sm:$0xff] %v219
    // Predicated region
    $region30: #{tpu_custom_call.1} parent=1 // pred_check
      _
    $region31: #{tpu_custom_call.1} parent=1 // pred_check_branch
      %223 = sbr.rel (0) target = $region33
    $region32: #{tpu_custom_call.1} parent=1 // pred_region
      %s225 = ssub.s32 256, 256
      %226 = vsyncadd [#allocation3], %s225
      %s227 = sshll.u32 [#allocation2], 4
      %s228 = int_to_ptr.vmem [resolvable:$true] %s227
      %233 = dma.vmem_to_hbm [thread:$0]  %s228, 256, %s7, [#allocation3], 128, 128, 8
    $region33: #{tpu_custom_call.1} parent=1 // pred_fallthru
      _
    // Predicated region
    $region34: #{tpu_custom_call.1} parent=1 // pred_check
      _
    $region35: #{tpu_custom_call.1} parent=1 // pred_check_branch
      %235 = sbr.rel (0) target = $region37
    $region36: #{tpu_custom_call.1} parent=1 // pred_region
      %236 = dma.done [#allocation3], 256
    $region37: #{tpu_custom_call.1} parent=1 // pred_fallthru
      _
    %237 = vsyncpa [#allocation3], 1

</llo_original>
